<compile_context>
chip_gen: v6e
topology: v6e:2x2x1
jax: 0.10.0
libtpu: 0.0.40
codegen_flags: <defaults>
</compile_context>

<pallas_src>
import jax
import jax.numpy as jnp
from jax.experimental import pallas as pl
from jax.experimental.pallas import tpu as pltpu

_LANE = 128                  # TPU lane width: last dim of every block
_MIN_PALLAS_ELEMS = 1 << 15  # below this, a lone XLA convert wins (launch overhead)
_MEGACORE_SPLIT_ROWS = 1024  # single-block cases >= this are split into 2 grid steps


def _pick_default_tm():
    """Rows per block, chosen per chip generation.

    8192 rows -> ~5 MiB/step (~10 MiB double-buffered): fits v5e's 16 MiB
    scoped-VMEM default and is well past the HBM-roofline plateau on v5e/v6e.
    v7x (~3.2 TB/s HBM) amortizes its per-step pipeline overhead better with
    2x bigger blocks (~20 MiB double-buffered < 32 MiB scoped default).
    """
    try:
        kind = jax.devices()[0].device_kind.lower()
    except Exception:  # defensive: never expected when a TPU backend is present
        kind = ""
    return 16384 if "v7" in kind else 8192


def _echo_to_f32_kernel(x_ref, o_ref):
    # Elementwise cast/copy — the whole "forward" of the module.
    o_ref[...] = x_ref[...].astype(jnp.float32)


def numpy_echo_to_tensor(x, *, tm=None, min_pallas_elems=_MIN_PALLAS_ELEMS):
    """Pallas equivalent of NumpyEchoToTensor().forward(x): identity + float32 cast."""
    x = jnp.asarray(x)

    # torch .float() on an already-float tensor is a no-op: zero HBM traffic.
    if x.dtype == jnp.float32:
        return x

    orig_shape = x.shape
    n = x.size

    # Fast path: empty / tiny inputs, or sizes not a multiple of 128 lanes.
    # A single XLA convert is already one HBM-roofline pass; a Pallas call with
    # pad + slice plumbing would only add HBM traffic and launch overhead.
    # (Note: int32 values with |v| > 2^24 lose precision in the f32 cast — this
    # matches torch's .float() semantics.)
    if n == 0 or n < min_pallas_elems or n % _LANE != 0:
        return x.astype(jnp.float32)

    rows = n // _LANE
    x2d = jnp.ravel(x).reshape(rows, _LANE)  # free for a contiguous input

    itemsize = jnp.dtype(x.dtype).itemsize
    # Sublane packing multiple: 32 for 1-byte dtypes, 16 for 2-byte, 8 for 4-byte.
    packing = max(8, 32 // max(1, itemsize))

    if tm is None:
        tm = _pick_default_tm()

    if rows <= tm:
        if rows >= _MEGACORE_SPLIT_ROWS and rows >= 2 * packing:
            # Keep >= 2 grid steps so ("parallel",) can shard across both
            # TensorCores on v7x instead of leaving one idle.
            tm_eff = ((pl.cdiv(rows, 2) + packing - 1) // packing) * packing
        else:
            tm_eff = rows  # single full-array block (always a legal block shape)
    else:
        # Round down to the dtype's native sublane packing so loads stay
        # full-vreg / unmasked; the cdiv grid masks the ragged last block.
        tm_eff = max(packing, (min(tm, rows) // packing) * packing)

    grid = pl.cdiv(rows, tm_eff)

    out2d = pl.pallas_call(
        _echo_to_f32_kernel,
        out_shape=jax.ShapeDtypeStruct((rows, _LANE), jnp.float32),
        grid_spec=pltpu.PrefetchScalarGridSpec(
            num_scalar_prefetch=0,
            grid=(grid,),
            in_specs=[pl.BlockSpec((tm_eff, _LANE), lambda i: (i, 0))],
            out_specs=pl.BlockSpec((tm_eff, _LANE), lambda i: (i, 0)),
        ),
        compiler_params=pltpu.CompilerParams(
            # Pure streaming copy: grid steps are independent, so let the
            # runtime shard them across TensorCores (v7x megacore).
            dimension_semantics=("parallel",),
        ),
        cost_estimate=pl.CostEstimate(
            flops=0,
            transcendentals=0,
            bytes_accessed=n * (itemsize + 4),  # itemsize B in + 4 B out per elem
        ),
    )(x2d)

    return out2d.reshape(orig_shape)


if __name__ == "__main__":
    key = jax.random.PRNGKey(0)
    k1, k2, k3, k4 = jax.random.split(key, 4)

    # 1) Small NCHW-style uint8 image batch (2048 elems): fast path (plain convert).
    x_small = jax.random.randint(k1, (2, 4, 16, 16), 0, 255,
                                 dtype=jnp.int32).astype(jnp.uint8)
    out_small = jax.block_until_ready(numpy_echo_to_tensor(x_small))

    # 2) Same input forced through the Pallas kernel (single full-array block).
    out_small_pl = jax.block_until_ready(
        numpy_echo_to_tensor(x_small, min_pallas_elems=0))

    # 3) Medium 128-aligned uint8 input at the default tile: rows=6144 fits one
    #    block, so it is split into a 2-step grid for megacore sharding.
    x_med = jax.random.randint(k2, (2, 3, 512, 256), 0, 255,
                               dtype=jnp.int32).astype(jnp.uint8)
    out_med = jax.block_until_ready(numpy_echo_to_tensor(x_med))

    # 4) Same slab with a small non-packing-aligned user tile (tm=1000 -> 992 for
    #    uint8): multi-step cdiv grid with a masked ragged last block.
    out_med_small_tm = jax.block_until_ready(numpy_echo_to_tensor(x_med, tm=1000))

    # 5) 128-aligned int32 input (packing multiple 8), single full-array block.
    x_i32 = jax.random.randint(k3, (4, 4, 64, 32), -1000, 1000, dtype=jnp.int32)
    out_i32 = jax.block_until_ready(numpy_echo_to_tensor(x_i32))

    # 6) Non-128-aligned int32 input: plain-convert fallback (no pad / slice passes).
    x_odd = jax.random.randint(k4, (4, 3, 129, 65), -1000, 1000, dtype=jnp.int32)
    out_odd = jax.block_until_ready(
        numpy_echo_to_tensor(x_odd, min_pallas_elems=0))

    # 7) Already-float32 input: early return, zero memory traffic.
    x_f32 = jax.random.normal(k1, (2, 4, 16, 16), dtype=jnp.float32)
    out_f32 = jax.block_until_ready(numpy_echo_to_tensor(x_f32))

    checks = ((out_small, x_small), (out_small_pl, x_small), (out_med, x_med),
              (out_med_small_tm, x_med), (out_i32, x_i32), (out_odd, x_odd),
              (out_f32, x_f32))
    for out, ref_in in checks:
        ref = ref_in.astype(jnp.float32)
        assert out.shape == ref.shape, (out.shape, ref.shape)
        assert out.dtype == jnp.float32
        assert bool(jnp.all(out == ref))

    print("KERNEL_OK")
</pallas_src>

<mosaic_0001>
module attributes {stable_mosaic.version = 11 : i64} {
  func.func @_echo_to_f32_kernel(%arg0: i32, %arg1: memref<16x128xi8, #tpu.memory_space<vmem>>, %arg2: memref<16x128xf32, #tpu.memory_space<vmem>>) attributes {dimension_semantics = [#tpu.dimension_semantics<parallel>], iteration_bounds = array<i64: 1>, scalar_prefetch = 0 : i64, scratch_operands = 0 : i64, tpu.core_type = #tpu.core_type<tc>, window_params = [{transform_indices = @transform_0, window_bounds = array<i64: 16, 128>}, {transform_indices = @transform_1, window_bounds = array<i64: 16, 128>}]} {
    %c0 = arith.constant 0 : index
    %c0_0 = arith.constant 0 : index
    %0 = vector.load %arg1[%c0, %c0_0] : memref<16x128xi8, #tpu.memory_space<vmem>>, vector<16x128xi8>
    %1 = arith.uitofp %0 : vector<16x128xi8> to vector<16x128xf32>
    %c0_1 = arith.constant 0 : index
    %c0_2 = arith.constant 0 : index
    %2 = vector.load %arg2[%c0_1, %c0_2] : memref<16x128xf32, #tpu.memory_space<vmem>>, vector<16x128xf32>
    tpu.vector_store %arg2[%c0_1, %c0_2], %1 {strides = array<i32>} : memref<16x128xf32, #tpu.memory_space<vmem>>, vector<16x128xf32>,
    return
  }
  func.func @transform_0(%arg0: i32) -> (i32, i32) {
    %c0_i32 = arith.constant 0 : i32
    %c0_i32_0 = arith.constant 0 : i32
    return %arg0, %c0_i32 : i32, i32
  }
  func.func @transform_1(%arg0: i32) -> (i32, i32) {
    %c0_i32 = arith.constant 0 : i32
    %c0_i32_0 = arith.constant 0 : i32
    return %arg0, %c0_i32 : i32, i32
  }
}

</mosaic_0001>

<llo_original>
// kernel: tpu_custom_call.1
$region0: #{tpu_custom_call.1}
  #allocation0 [shape = 'u32[]', space=smem, size = 0x4, offset = 0x4, fixed_abs, tag = 'smem constant byte address 0x4 - core index']
  #allocation1 [shape = 'u32[144,128]{1,0:T(1,128)}', space=vmem, size = 0x12000, scoped, tag = 'internal scratch']
  %s0 = inlined_call_operand.hbm [shape: u8[16,128], index: 0, kind: input, shape index: {}]
  %s1 = inlined_call_operand.hbm [shape: f32[16,128], index: 1, kind: output, shape index: {}]
  %s2 = sld [smem:[#allocation0]]
  $region18: #{tpu_custom_call.1} parent=0
    _
  %s4 = ssub.s32 1, %s2
  %s5 = scalar_select 0, %s4, %s2
  $region1: #{tpu_custom_call.1} parent=0
    #allocation2 [shape = 'u8[2048]{0}', space=vmem, size = 0x800, scoped, tag = 'input window, operand 0, single buffered']
    #allocation3 [shape = 's32[1]{0}', space=sflag, size = 0x4, scoped, tag = 'scoped memory for tpu_custom_call.1']
    #allocation4 [shape = 's32[1]{0}', space=sflag, size = 0x4, scoped, tag = 'scoped memory for tpu_custom_call.1']
    #allocation5 [shape = 'u8[8192]{0}', space=vmem, size = 0x2000, scoped, tag = 'output window, operand 0, single buffered']
    %6 = vsyncpa [#allocation3], 0
    %7 = vsyncpa [#allocation4], 0
    // Predicated region
    $region2: #{tpu_custom_call.1} parent=1 // pred_check
      _
    $region3: #{tpu_custom_call.1} parent=1 // pred_check_branch
      %9 = sbr.rel (0) target = $region5
    $region4: #{tpu_custom_call.1} parent=1 // pred_region
      %s11 = ssub.s32 64, 64
      %12 = vsyncadd [#allocation3], %s11
      %s13 = sshll.u32 [#allocation2], 4
      %s14 = int_to_ptr.vmem [resolvable:$true] %s13
      %19 = dma.hbm_to_vmem [thread:$0]  %s0, 64, %s14, [#allocation3], 32, 32, 2
    $region5: #{tpu_custom_call.1} parent=1 // pred_fallthru
      _
    // Predicated region
    $region6: #{tpu_custom_call.1} parent=1 // pred_check
      _
    $region7: #{tpu_custom_call.1} parent=1 // pred_check_branch
      %21 = sbr.rel (0) target = $region9
    $region8: #{tpu_custom_call.1} parent=1 // pred_region
      %22 = dma.done [#allocation3], 64
    $region9: #{tpu_custom_call.1} parent=1 // pred_fallthru
      _
    %v23 = vld [vmem:[#allocation2] sm:$0x3]
    %v24 = vld [vmem:[#allocation2 + $0x2] sm:$0x3]
    %v25 = vunpack.c.0.s8 %v23
    %v26 = vunpack.c.0.s8 %v24
    %v27 = vand.u32 %v25, 255
    %v28 = vand.u32 %v26, 255
    %v29 = vcvt.s32.f32 %v27
    %v30 = vcvt.s32.f32 %v28
    %31 = vst [vmem:[#allocation5] sm:$0xff] %v29
    %32 = vst [vmem:[#allocation5 + $0x8] sm:$0xff] %v30
    // Predicated region
    $region10: #{tpu_custom_call.1} parent=1 // pred_check
      _
    $region11: #{tpu_custom_call.1} parent=1 // pred_check_branch
      %34 = sbr.rel (0) target = $region13
    $region12: #{tpu_custom_call.1} parent=1 // pred_region
      %s36 = ssub.s32 256, 256
      %37 = vsyncadd [#allocation4], %s36
      %s38 = sshll.u32 [#allocation5], 4
      %s39 = int_to_ptr.vmem [resolvable:$true] %s38
      %44 = dma.vmem_to_hbm [thread:$0]  %s39, 256, %s1, [#allocation4], 128, 128, 8
    $region13: #{tpu_custom_call.1} parent=1 // pred_fallthru
      _
    // Predicated region
    $region14: #{tpu_custom_call.1} parent=1 // pred_check
      _
    $region15: #{tpu_custom_call.1} parent=1 // pred_check_branch
      %46 = sbr.rel (0) target = $region17
    $region16: #{tpu_custom_call.1} parent=1 // pred_region
      %47 = dma.done [#allocation4], 256
    $region17: #{tpu_custom_call.1} parent=1 // pred_fallthru
      _
    %48 = vsyncpa [#allocation3], 1
    %49 = vsyncpa [#allocation4], 1

</llo_original>
